<compile_context>
chip_gen: v6e
topology: v6e:2x2x1
jax: 0.10.0
libtpu: 0.0.40
codegen_flags: <defaults>
</compile_context>

<pallas_src>
import functools

import jax
import jax.numpy as jnp
from jax import lax
from jax.experimental import pallas as pl
from jax.experimental.pallas import tpu as pltpu

EPS = 1e-5  # PyTorch BatchNorm default eps


# ------------------------------ Pallas kernels ------------------------------


def x_stats_kernel(x_ref, s1_ref, g_ref, *, compute_dtype):
    """Pass 1 (per batch member): accumulate sum(x) over spatial and the Gram
    matrix X.X^T.  BatchNorm statistics of the ConvTranspose output are derived
    from these on the host -- no W.X recompute, no (8Cout x tS) temporaries.

    x_ref:  (Cin, tS)    spatial tile (channel-major, lane-dense spatial axis)
    s1_ref: (Cin, 1)     resident per-batch accumulator (f32)
    g_ref:  (Cin, Cin)   resident per-batch accumulator (f32)
    """

    @pl.when(pl.program_id(1) == 0)
    def _init():
        s1_ref[...] = jnp.zeros_like(s1_ref)
        g_ref[...] = jnp.zeros_like(g_ref)

    x = x_ref[...].astype(compute_dtype)   # no-op when the input is pre-cast
    s1_ref[...] += jnp.sum(x.astype(jnp.float32), axis=1, keepdims=True)
    # X.X^T, contracting the lane (spatial) axis of both operands (MXU).
    g_ref[...] += lax.dot_general(
        x, x, dimension_numbers=(((1,), (1,)), ((), ())),
        preferred_element_type=jnp.float32)


def upconv_apply_kernel(x_ref, w_ref, scale_ref, shift_ref, o_ref, *,
                        compute_dtype):
    """Pass 2: ConvTranspose3d(k=2,s=2) matmul fused with the BatchNorm affine.

    o_ref: (8*Cout, tS) lane-dense, stored in compute_dtype (bf16 by default).
    scale/shift: (8*Cout, 1) f32.  The ConvTranspose bias is already folded into
    shift (it cancels against the batch mean), so the epilogue is a single FMA.
    """
    x = x_ref[...].astype(compute_dtype)
    y = jnp.dot(w_ref[...], x, preferred_element_type=jnp.float32)
    o_ref[...] = (y * scale_ref[...] + shift_ref[...]).astype(o_ref.dtype)


# ------------------------------ host-side glue ------------------------------


def _round_up(x, m):
    return ((x + m - 1) // m) * m


def _choose_spatial_tile(S1, requested, cin, cout8, cbytes, budget=24 << 20):
    """Lane-dense tile: multiple of 128, capped by `requested`, shrunk so the
    double-buffered K2 working set stays inside `budget` (v7x 64 MiB safe)."""
    cap = min(_round_up(S1, 128), _round_up(max(requested, 128), 128))
    per_col = 2 * cin * cbytes + 2 * cout8 * cbytes      # x + out, 2 buffers each
    fixed = 2 * cout8 * cin * cbytes + 8 * cout8 * 4     # weight + scale/shift
    avail = max(budget - fixed, 128 * per_col)
    return int(min(cap, max(128, (avail // per_col) // 128 * 128)))


def _vmem_limit(per_step_bytes):
    """Scoped-VMEM limit: >= 32 MiB (raises v5e's 16 MiB default), sized from
    the actual buffers with 2x slack, capped at v7x's 64 MiB physical VMEM."""
    return int(min(64 << 20, max(32 << 20, 2 * per_step_bytes + (4 << 20))))


def up_concat_forward(x1, x2, params, *, spatial_tile=1024,
                      compute_dtype=jnp.bfloat16):
    """Up_Concat forward.  x1: (B, Cin, D1, H1, W1), x2: (B, Cenc, D2, H2, W2).
    Returns (B, Cout + Cenc, D2, H2, W2) in x2.dtype (same as the torch module)."""
    B, Cin, D1, H1, W1 = x1.shape
    _, Cenc, D2, H2, W2 = x2.shape
    up_w = params["up_w"]                      # torch layout (Cin, Cout, 2, 2, 2)
    Cout = up_w.shape[1]
    S1 = D1 * H1 * W1
    out_dtype = x2.dtype

    # ConvTranspose weight -> (8*Cout, Cin), rows ordered (kd, kh, kw, co).
    wall = jnp.transpose(up_w, (2, 3, 4, 1, 0)).reshape(8 * Cout, Cin)
    wall_c = wall.astype(compute_dtype)        # resident MXU operand, cast once

    cbytes = jnp.dtype(compute_dtype).itemsize
    tS = _choose_spatial_tile(S1, spatial_tile, Cin, 8 * Cout, cbytes)
    nS = pl.cdiv(S1, tS)
    S1p = nS * tS

    x1r = x1.reshape(B, Cin, S1)
    if S1p != S1:
        # Pad the flattened spatial axis to whole lane-dense tiles; the cast
        # fuses into the pad copy.  Zero columns add exactly nothing to the
        # statistics below, and the padded tail of up8 is sliced off later.
        x1k = jnp.pad(x1r.astype(compute_dtype),
                      ((0, 0), (0, 0), (0, S1p - S1)))
    else:
        # No pad needed: keep caller dtype and cast in-kernel (hidden under DMA)
        # instead of paying an extra full HBM pass for a host-side cast.
        x1k = x1r
    x_bytes = x1k.dtype.itemsize

    # ---- K1: per-batch x statistics (sum + Gram), megacore over batch ----
    k1_step = 2 * Cin * tS * x_bytes + 2 * (Cin + Cin * Cin) * 4
    s1_b, g_b = pl.pallas_call(
        functools.partial(x_stats_kernel, compute_dtype=compute_dtype),
        out_shape=(
            jax.ShapeDtypeStruct((B, Cin, 1), jnp.float32),
            jax.ShapeDtypeStruct((B, Cin, Cin), jnp.float32),
        ),
        grid=(B, nS),
        in_specs=[pl.BlockSpec((None, Cin, tS), lambda b, s: (b, 0, s))],
        out_specs=(
            pl.BlockSpec((None, Cin, 1), lambda b, s: (b, 0, 0)),
            pl.BlockSpec((None, Cin, Cin), lambda b, s: (b, 0, 0)),
        ),
        compiler_params=pltpu.CompilerParams(
            dimension_semantics=("parallel", "arbitrary"),
            vmem_limit_bytes=_vmem_limit(k1_step)),
    )(x1k)

    # ---- Finalize BN statistics: O(Cout*Cin^2) scalar work (XLA glue) ----
    cnt = jnp.float32(B * S1)
    mean_x = s1_b.sum(axis=0)[:, 0] / cnt                     # (Cin,)
    gram = g_b.sum(axis=0) / cnt                              # (Cin, Cin)
    m_rows = wall @ mean_x                                    # E[Wx] per row
    e2_rows = jnp.einsum("ij,jk,ik->i", wall, gram, wall)     # E[(Wx)^2] per row
    m_c = m_rows.reshape(8, Cout).mean(axis=0)                # per-channel E[Wx]
    e2_c = e2_rows.reshape(8, Cout).mean(axis=0)
    var_c = jnp.maximum(e2_c - m_c * m_c, 0.0)                # biased batch var
    scale_c = params["up_gamma"] * lax.rsqrt(var_c + EPS)
    # Train-mode BN: the ConvTranspose bias cancels against the batch mean,
    # so it folds into the shift and never enters the kernels.
    shift_c = params["up_beta"] - m_c * scale_c
    scale8 = jnp.tile(scale_c, 8).reshape(8 * Cout, 1).astype(jnp.float32)
    shift8 = jnp.tile(shift_c, 8).reshape(8 * Cout, 1).astype(jnp.float32)

    # ---- K2: ConvTranspose matmul + BN affine, lane-dense bf16 output ----
    k2_step = (2 * Cin * tS * x_bytes + 2 * (8 * Cout) * tS * cbytes
               + 2 * (8 * Cout) * Cin * cbytes + 4 * (8 * Cout) * 4)
    up8 = pl.pallas_call(
        functools.partial(upconv_apply_kernel, compute_dtype=compute_dtype),
        out_shape=jax.ShapeDtypeStruct((B, 8 * Cout, S1p), compute_dtype),
        grid=(B, nS),
        in_specs=[
            pl.BlockSpec((None, Cin, tS), lambda b, s: (b, 0, s)),
            pl.BlockSpec((8 * Cout, Cin), lambda b, s: (0, 0)),
            pl.BlockSpec((8 * Cout, 1), lambda b, s: (0, 0)),
            pl.BlockSpec((8 * Cout, 1), lambda b, s: (0, 0)),
        ],
        out_specs=pl.BlockSpec((None, 8 * Cout, tS), lambda b, s: (b, 0, s)),
        compiler_params=pltpu.CompilerParams(
            dimension_semantics=("parallel", "parallel"),
            vmem_limit_bytes=_vmem_limit(k2_step)),
    )(x1k, wall_c, scale8, shift8)

    # ---- Final assembly (pure data movement, kept in compute_dtype) ----
    # TODO(synk): the 2x2x2 stride-2 interleave is a scatter that BlockSpec
    # cannot express as rectangular tiles; it stays as one fused XLA transpose
    # copy -- now over a bf16 array, i.e. half the HBM traffic of before.
    if S1p != S1:
        up8 = up8[:, :, :S1]
    up = up8.reshape(B, 2, 2, 2, Cout, D1, H1, W1)
    up = jnp.transpose(up, (0, 4, 5, 1, 6, 2, 7, 3))   # (B,Cout,D1,2,H1,2,W1,2)
    up = up.reshape(B, Cout, 2 * D1, 2 * H1, 2 * W1)
    dZ, dY, dX = D2 - 2 * D1, H2 - 2 * H1, W2 - 2 * W1
    up = jnp.pad(
        up,
        ((0, 0), (0, 0),
         (dZ // 2, dZ - dZ // 2),
         (dY // 2, dY - dY // 2),
         (dX // 2, dX - dX // 2)))
    # Uppad + channel concat; the cast to the module dtype fuses into the copy.
    return jnp.concatenate([up.astype(out_dtype), x2.astype(out_dtype)], axis=1)


# ------------------------------ reference (f32) ------------------------------


def reference_up_concat(x1, x2, params):
    wt = params["up_w"]
    B, Cin, D1, H1, W1 = x1.shape
    Cout = wt.shape[1]
    y = jnp.einsum("bcdhw,copqr->bodphqwr", x1, wt,
                   precision=lax.Precision.HIGHEST)
    y = y.reshape(B, Cout, 2 * D1, 2 * H1, 2 * W1)
    y = y + params["up_b"][None, :, None, None, None]
    mean = y.mean(axis=(0, 2, 3, 4), keepdims=True)
    var = ((y - mean) ** 2).mean(axis=(0, 2, 3, 4), keepdims=True)
    yn = (y - mean) * lax.rsqrt(var + EPS)
    yn = (yn * params["up_gamma"][None, :, None, None, None]
          + params["up_beta"][None, :, None, None, None])
    D2, H2, W2 = x2.shape[2:]
    dZ, dY, dX = D2 - 2 * D1, H2 - 2 * H1, W2 - 2 * W1
    yn = jnp.pad(
        yn,
        ((0, 0), (0, 0),
         (dZ // 2, dZ - dZ // 2),
         (dY // 2, dY - dY // 2),
         (dX // 2, dX - dX // 2)))
    return jnp.concatenate([yn, x2], axis=1)


# --------------------------------- driver -----------------------------------

if __name__ == "__main__":
    key = jax.random.PRNGKey(0)
    ks = jax.random.split(key, 6)

    B = 2
    in_channels, out_channels, enc_channels = 8, 4, 4   # out = in // 2
    D1 = H1 = W1 = 8
    D2 = H2 = W2 = 18     # 2*8 = 16 upsampled, +1 pad each side (exercises Uppad)

    # PyTorch-convention NCDHW inputs.
    x1 = jax.random.normal(ks[0], (B, in_channels, D1, H1, W1), jnp.float32)
    x2 = jax.random.normal(ks[1], (B, enc_channels, D2, H2, W2), jnp.float32)

    params = dict(
        # ConvTranspose3d(in, out, k=2, s=2): weight (Cin, Cout, 2, 2, 2)
        up_w=0.1 * jax.random.normal(
            ks[2], (in_channels, out_channels, 2, 2, 2), jnp.float32),
        up_b=0.1 * jax.random.normal(ks[3], (out_channels,), jnp.float32),
        # BatchNorm3d affine params
        up_gamma=1.0 + 0.1 * jax.random.normal(ks[4], (out_channels,), jnp.float32),
        up_beta=0.1 * jax.random.normal(ks[5], (out_channels,), jnp.float32),
    )

    ref = reference_up_concat(x1, x2, params)

    # Performance path: bf16 MXU operands + bf16 up8 store (HBM-bandwidth bound).
    # Small spatial_tile so the demo exercises a multi-step (B, nS) grid.
    fwd = jax.jit(functools.partial(up_concat_forward, spatial_tile=128))
    out = jax.block_until_ready(fwd(x1, x2, params))
    assert out.shape == (B, out_channels + enc_channels, D2, H2, W2), out.shape
    assert bool(jnp.all(jnp.isfinite(out)))
    err_bf16 = float(jnp.max(jnp.abs(out - ref)))
    assert err_bf16 < 1e-1, f"bf16-path max abs err {err_bf16}"

    # Tighter correctness check: same kernels/tiling with an f32 compute path
    # (tolerance leaves margin for the TPU matmul-pass precision of either side).
    fwd32 = jax.jit(functools.partial(up_concat_forward, spatial_tile=128,
                                      compute_dtype=jnp.float32))
    out32 = jax.block_until_ready(fwd32(x1, x2, params))
    err32 = float(jnp.max(jnp.abs(out32 - ref)))
    assert err32 < 3e-2, f"f32-path max abs err {err32}"

    print("KERNEL_OK")
</pallas_src>

<mosaic_0001>
module attributes {stable_mosaic.version = 11 : i64} {
  func.func @x_stats_kernel(%arg0: i32, %arg1: i32, %arg2: memref<1x8x128xf32, #tpu.memory_space<vmem>>, %arg3: memref<1x8x1xf32, #tpu.memory_space<vmem>>, %arg4: memref<1x8x8xf32, #tpu.memory_space<vmem>>) attributes {dimension_semantics = [#tpu.dimension_semantics<parallel>, #tpu.dimension_semantics<arbitrary>], iteration_bounds = array<i64: 2, 4>, scalar_prefetch = 0 : i64, scratch_operands = 0 : i64, tpu.core_type = #tpu.core_type<tc>, window_params = [{transform_indices = @transform_0, window_bounds = array<i64: 1, 8, 128>}, {transform_indices = @transform_1, window_bounds = array<i64: 1, 8, 1>}, {transform_indices = @transform_2, window_bounds = array<i64: 1, 8, 8>}]} {
    %c0_i32 = arith.constant 0 : i32
    %0 = arith.cmpi eq, %arg1, %c0_i32 : i32
    %1 = arith.extui %0 : i1 to i32
    %c0_i32_0 = arith.constant 0 : i32
    %2 = arith.cmpi ne, %1, %c0_i32_0 : i32
    scf.if %2 {
      %cst_16 = arith.constant 0.000000e+00 : f32
      %22 = vector.broadcast %cst_16 : f32 to vector<8x1xf32>
      %c0_17 = arith.constant 0 : index
      %c0_18 = arith.constant 0 : index
      %c0_19 = arith.constant 0 : index
      %23 = vector.load %arg3[%c0_17, %c0_18, %c0_19] : memref<1x8x1xf32, #tpu.memory_space<vmem>>, vector<1x8x1xf32>
      %24 = vector.shape_cast %23 : vector<1x8x1xf32> to vector<8x1xf32>
      %25 = vector.shape_cast %22 : vector<8x1xf32> to vector<1x8x1xf32>
      tpu.vector_store %arg3[%c0_17, %c0_18, %c0_19], %25 {strides = array<i32>} : memref<1x8x1xf32, #tpu.memory_space<vmem>>, vector<1x8x1xf32>,
      %cst_20 = arith.constant 0.000000e+00 : f32
      %26 = vector.broadcast %cst_20 : f32 to vector<8x8xf32>
      %c0_21 = arith.constant 0 : index
      %c0_22 = arith.constant 0 : index
      %c0_23 = arith.constant 0 : index
      %27 = vector.load %arg4[%c0_21, %c0_22, %c0_23] : memref<1x8x8xf32, #tpu.memory_space<vmem>>, vector<1x8x8xf32>
      %28 = vector.shape_cast %27 : vector<1x8x8xf32> to vector<8x8xf32>
      %29 = vector.shape_cast %26 : vector<8x8xf32> to vector<1x8x8xf32>
      tpu.vector_store %arg4[%c0_21, %c0_22, %c0_23], %29 {strides = array<i32>} : memref<1x8x8xf32, #tpu.memory_space<vmem>>, vector<1x8x8xf32>,
    } else {
    }
    %c0 = arith.constant 0 : index
    %c0_1 = arith.constant 0 : index
    %c0_2 = arith.constant 0 : index
    %3 = vector.load %arg2[%c0, %c0_1, %c0_2] : memref<1x8x128xf32, #tpu.memory_space<vmem>>, vector<1x8x128xf32>
    %4 = vector.shape_cast %3 : vector<1x8x128xf32> to vector<8x128xf32>
    %5 = arith.truncf %4 : vector<8x128xf32> to vector<8x128xbf16>
    %c0_3 = arith.constant 0 : index
    %c0_4 = arith.constant 0 : index
    %c0_5 = arith.constant 0 : index
    %6 = vector.load %arg3[%c0_3, %c0_4, %c0_5] : memref<1x8x1xf32, #tpu.memory_space<vmem>>, vector<1x8x1xf32>
    %7 = vector.shape_cast %6 : vector<1x8x1xf32> to vector<8x1xf32>
    %8 = arith.extf %5 : vector<8x128xbf16> to vector<8x128xf32>
    %cst = arith.constant dense<0.000000e+00> : vector<8xf32>
    %9 = vector.multi_reduction <add>, %8, %cst [1] : vector<8x128xf32> to vector<8xf32>
    %10 = vector.shape_cast %9 : vector<8xf32> to vector<8x1xf32>
    %11 = arith.addf %7, %10 : vector<8x1xf32>
    %c0_6 = arith.constant 0 : index
    %c0_7 = arith.constant 0 : index
    %c0_8 = arith.constant 0 : index
    %12 = vector.load %arg3[%c0_6, %c0_7, %c0_8] : memref<1x8x1xf32, #tpu.memory_space<vmem>>, vector<1x8x1xf32>
    %13 = vector.shape_cast %12 : vector<1x8x1xf32> to vector<8x1xf32>
    %14 = vector.shape_cast %11 : vector<8x1xf32> to vector<1x8x1xf32>
    tpu.vector_store %arg3[%c0_6, %c0_7, %c0_8], %14 {strides = array<i32>} : memref<1x8x1xf32, #tpu.memory_space<vmem>>, vector<1x8x1xf32>,
    %c0_9 = arith.constant 0 : index
    %c0_10 = arith.constant 0 : index
    %c0_11 = arith.constant 0 : index
    %15 = vector.load %arg4[%c0_9, %c0_10, %c0_11] : memref<1x8x8xf32, #tpu.memory_space<vmem>>, vector<1x8x8xf32>
    %16 = vector.shape_cast %15 : vector<1x8x8xf32> to vector<8x8xf32>
    %cst_12 = arith.constant dense<0.000000e+00> : vector<8x8xf32>
    %17 = tpu.matmul %5, %5, %cst_12 {dimension_numbers = #tpu.dot_dimension_numbers<[1], [1], [0], [0], [0, 0, 1, 0], [], []>} : vector<8x128xbf16>, vector<8x128xbf16>, vector<8x8xf32> -> vector<8x8xf32>
    %18 = arith.addf %16, %17 : vector<8x8xf32>
    %c0_13 = arith.constant 0 : index
    %c0_14 = arith.constant 0 : index
    %c0_15 = arith.constant 0 : index
    %19 = vector.load %arg4[%c0_13, %c0_14, %c0_15] : memref<1x8x8xf32, #tpu.memory_space<vmem>>, vector<1x8x8xf32>
    %20 = vector.shape_cast %19 : vector<1x8x8xf32> to vector<8x8xf32>
    %21 = vector.shape_cast %18 : vector<8x8xf32> to vector<1x8x8xf32>
    tpu.vector_store %arg4[%c0_13, %c0_14, %c0_15], %21 {strides = array<i32>} : memref<1x8x8xf32, #tpu.memory_space<vmem>>, vector<1x8x8xf32>,
    return
  }
  func.func @transform_0(%arg0: i32, %arg1: i32) -> (i32, i32, i32) {
    %c0_i32 = arith.constant 0 : i32
    %c0_i32_0 = arith.constant 0 : i32
    return %arg0, %c0_i32, %arg1 : i32, i32, i32
  }
  func.func @transform_1(%arg0: i32, %arg1: i32) -> (i32, i32, i32) {
    %c0_i32 = arith.constant 0 : i32
    %c0_i32_0 = arith.constant 0 : i32
    %c0_i32_1 = arith.constant 0 : i32
    return %arg0, %c0_i32, %c0_i32_0 : i32, i32, i32
  }
  func.func @transform_2(%arg0: i32, %arg1: i32) -> (i32, i32, i32) {
    %c0_i32 = arith.constant 0 : i32
    %c0_i32_0 = arith.constant 0 : i32
    %c0_i32_1 = arith.constant 0 : i32
    return %arg0, %c0_i32, %c0_i32_0 : i32, i32, i32
  }
}

module attributes {stable_mosaic.version = 11 : i64} {
  func.func @upconv_apply_kernel(%arg0: i32, %arg1: i32, %arg2: memref<1x8x128xf32, #tpu.memory_space<vmem>>, %arg3: memref<32x8xbf16, #tpu.memory_space<vmem>>, %arg4: memref<32x1xf32, #tpu.memory_space<vmem>>, %arg5: memref<32x1xf32, #tpu.memory_space<vmem>>, %arg6: memref<1x32x128xbf16, #tpu.memory_space<vmem>>) attributes {dimension_semantics = [#tpu.dimension_semantics<parallel>, #tpu.dimension_semantics<parallel>], iteration_bounds = array<i64: 2, 4>, scalar_prefetch = 0 : i64, scratch_operands = 0 : i64, tpu.core_type = #tpu.core_type<tc>, window_params = [{transform_indices = @transform_0, window_bounds = array<i64: 1, 8, 128>}, {pipeline_mode = #tpu.pipeline_mode<synchronous>, transform_indices = @transform_1, window_bounds = array<i64: 32, 8>}, {pipeline_mode = #tpu.pipeline_mode<synchronous>, transform_indices = @transform_2, window_bounds = array<i64: 32, 1>}, {pipeline_mode = #tpu.pipeline_mode<synchronous>, transform_indices = @transform_3, window_bounds = array<i64: 32, 1>}, {transform_indices = @transform_4, window_bounds = array<i64: 1, 32, 128>}]} {
    %c0 = arith.constant 0 : index
    %c0_0 = arith.constant 0 : index
    %c0_1 = arith.constant 0 : index
    %0 = vector.load %arg2[%c0, %c0_0, %c0_1] : memref<1x8x128xf32, #tpu.memory_space<vmem>>, vector<1x8x128xf32>
    %1 = vector.shape_cast %0 : vector<1x8x128xf32> to vector<8x128xf32>
    %2 = arith.truncf %1 : vector<8x128xf32> to vector<8x128xbf16>
    %c0_2 = arith.constant 0 : index
    %c0_3 = arith.constant 0 : index
    %3 = vector.load %arg3[%c0_2, %c0_3] : memref<32x8xbf16, #tpu.memory_space<vmem>>, vector<32x8xbf16>
    %cst = arith.constant dense<0.000000e+00> : vector<32x128xf32>
    %4 = tpu.matmul %3, %2, %cst {dimension_numbers = #tpu.dot_dimension_numbers<[1], [0], [0], [1], [0, 0, 1, 1], [], []>} : vector<32x8xbf16>, vector<8x128xbf16>, vector<32x128xf32> -> vector<32x128xf32>
    %c0_4 = arith.constant 0 : index
    %c0_5 = arith.constant 0 : index
    %5 = vector.load %arg4[%c0_4, %c0_5] : memref<32x1xf32, #tpu.memory_space<vmem>>, vector<32x1xf32>
    %6 = vector.broadcast %5 : vector<32x1xf32> to vector<32x128xf32>
    %7 = arith.mulf %4, %6 : vector<32x128xf32>
    %c0_6 = arith.constant 0 : index
    %c0_7 = arith.constant 0 : index
    %8 = vector.load %arg5[%c0_6, %c0_7] : memref<32x1xf32, #tpu.memory_space<vmem>>, vector<32x1xf32>
    %9 = vector.broadcast %8 : vector<32x1xf32> to vector<32x128xf32>
    %10 = arith.addf %7, %9 : vector<32x128xf32>
    %11 = arith.truncf %10 : vector<32x128xf32> to vector<32x128xbf16>
    %c0_8 = arith.constant 0 : index
    %c0_9 = arith.constant 0 : index
    %c0_10 = arith.constant 0 : index
    %12 = vector.load %arg6[%c0_8, %c0_9, %c0_10] : memref<1x32x128xbf16, #tpu.memory_space<vmem>>, vector<1x32x128xbf16>
    %13 = vector.shape_cast %12 : vector<1x32x128xbf16> to vector<32x128xbf16>
    %14 = vector.shape_cast %11 : vector<32x128xbf16> to vector<1x32x128xbf16>
    tpu.vector_store %arg6[%c0_8, %c0_9, %c0_10], %14 {strides = array<i32>} : memref<1x32x128xbf16, #tpu.memory_space<vmem>>, vector<1x32x128xbf16>,
    return
  }
  func.func @transform_0(%arg0: i32, %arg1: i32) -> (i32, i32, i32) {
    %c0_i32 = arith.constant 0 : i32
    %c0_i32_0 = arith.constant 0 : i32
    return %arg0, %c0_i32, %arg1 : i32, i32, i32
  }
  func.func @transform_1(%arg0: i32, %arg1: i32) -> (i32, i32) {
    %c0_i32 = arith.constant 0 : i32
    %c0_i32_0 = arith.constant 0 : i32
    %c0_i32_1 = arith.constant 0 : i32
    return %c0_i32, %c0_i32_0 : i32, i32
  }
  func.func @transform_2(%arg0: i32, %arg1: i32) -> (i32, i32) {
    %c0_i32 = arith.constant 0 : i32
    %c0_i32_0 = arith.constant 0 : i32
    %c0_i32_1 = arith.constant 0 : i32
    return %c0_i32, %c0_i32_0 : i32, i32
  }
  func.func @transform_3(%arg0: i32, %arg1: i32) -> (i32, i32) {
    %c0_i32 = arith.constant 0 : i32
    %c0_i32_0 = arith.constant 0 : i32
    %c0_i32_1 = arith.constant 0 : i32
    return %c0_i32, %c0_i32_0 : i32, i32
  }
  func.func @transform_4(%arg0: i32, %arg1: i32) -> (i32, i32, i32) {
    %c0_i32 = arith.constant 0 : i32
    %c0_i32_0 = arith.constant 0 : i32
    return %arg0, %c0_i32, %arg1 : i32, i32, i32
  }
}

</mosaic_0001>

<llo_original>
// kernel: tile.18
$region0: #{tile.18}
  #allocation0 [shape = 's32[1]{0}', space=sflag, size = 0x4, scoped, tag = 'scoped memory for tile.18']
  %s0 = inlined_call_operand.vmem [shape: f32[4], index: 0, kind: input, shape index: {}]
  %s1 = inlined_call_operand.vmem [shape: f32[8,4], index: 1, kind: output, shape index: {}]
  // Predicated region
  $region2: #{tile.18} parent=0 // pred_check
    _
  $region3: #{tile.18} parent=0 // pred_check_branch
    %3 = sbr.rel (0) target = $region5
  $region4: #{tile.18} parent=0 // pred_region
    _
  $region5: #{tile.18} parent=0 // pred_fallthru
    _
  %v4 = vld [vmem:[%s0] ss:$0 sm:$0xff]
  %5 = vst [vmem:[%s1] sm:$0xff] %v4

// kernel: tile.0
$region0: #{tile.0}
  %s0 = inlined_call_operand.vmem [shape: f32[8,4], index: 0, kind: input, shape index: {}]
  %s1 = inlined_call_operand.vmem [shape: f32[32,1], index: 1, kind: output, shape index: {}]
  %v2 = vld [vmem:[%s0] sm:$0xff]
  %vm3 = vcmask 7168
  %4 = vst.msk [vmem:[%s1] ss:$4 sm:$0xff] %vm3, %v2
  %v5 = vld [vmem:[%s0] sm:$0xff]
  %6 = vrot.lane.b32.xlu0 %v5, 127
  %v7 = vpop.permute.xlu0 %6
  %vm8 = vcmask 7168
  %s9 = scalar_lea.vmem %s1, 1
  %10 = vst.msk [vmem:[%s9] ss:$4 sm:$0xff] %vm8, %v7
  %v11 = vld [vmem:[%s0] sm:$0xff]
  %12 = vrot.lane.b32.xlu0 %v11, 126
  %v13 = vpop.permute.xlu0 %12
  %vm14 = vcmask 7168
  %s15 = scalar_lea.vmem %s1, 2
  %16 = vst.msk [vmem:[%s15] ss:$4 sm:$0xff] %vm14, %v13
  %v17 = vld [vmem:[%s0] sm:$0xff]
  %18 = vrot.lane.b32.xlu0 %v17, 125
  %v19 = vpop.permute.xlu0 %18
  %vm20 = vcmask 7168
  %s21 = scalar_lea.vmem %s1, 3
  %22 = vst.msk [vmem:[%s21] ss:$4 sm:$0xff] %vm20, %v19

// kernel: up_concat_forward.2
$region0: #{up_concat_forward.2}
  #allocation0 [shape = 'u32[]', space=smem, size = 0x4, offset = 0x4, fixed_abs, tag = 'smem constant byte address 0x4 - core index']
  #allocation1 [shape = 'u32[144,128]{1,0:T(1,128)}', space=vmem, size = 0x12000, scoped, tag = 'internal scratch']
  %s0 = inlined_call_operand.vmem [shape: f32[2,8,512], index: 0, kind: input, shape index: {}]
  %s1 = inlined_call_operand.vmem [shape: f32[2,8,1], index: 1, kind: output, shape index: {0}]
  %s2 = inlined_call_operand.vmem [shape: f32[2,8,8], index: 2, kind: output, shape index: {1}]
  %3 = xla_tuple %s1, %s2
  %s4 = sld [smem:[#allocation0]]
  $region49: #{up_concat_forward.2} parent=0
    _
  %s6 = ssub.s32 1, %s4
  %s7 = scalar_select 0, %s6, %s4
  loop: start=0, step=1, limit=10
  $region2: #{up_concat_forward.2} parent=0 // loop_pre_header
    _
  $region3: #{up_concat_forward.2} parent=0 // loop_header
    %s9 = sphi 0, %s13
    %p10 = scmp.ge.s32.totalorder %s9, 10
    %s16 = sphi 0, %s28
    %s17 = sphi 0, %s24
    %s18 = sphi 0, %s16
    %s19 = sphi 0, %s17
    %s20 = sphi 0, %s18
    %s21 = sphi 0, %s19
    %s33 = sphi 0, %s35
    %s36 = sphi 0, %s33
    %s37 = sphi 0, %s36
    %s53 = sphi 0, %s37
    %s59 = sphi 0, %s61
    %s62 = sphi 0, %s59
    %s63 = sphi 0, %s62
    %s79 = sphi 0, %s63
    %s85 = sphi 0, %s87
    %s88 = sphi 0, %s85
    %s89 = sphi 0, %s88
    %s105 = sphi 0, %s89
  $region4: #{up_concat_forward.2} parent=0 // loop_header_branch
    %12 = sbr.rel (%p10) target = $region8
  $region5: #{up_concat_forward.2} parent=0 // loop_body
    %s14 = ssub.s32 %s9, 1
    %s15 = ssub.s32 %s9, 2
    %s22 = sadd.s32 1, %s17
    %p23 = scmp.ge.s32.totalorder %s22, 4
    %s24 = scalar_select %p23, 0, %s22
    %s25 = sadd.s32 1, %s16
    %s26 = scalar_select %p23, %s25, %s16
    %p27 = scmp.ge.s32.totalorder %s26, 2
    %s28 = scalar_select %p27, 0, %s26
    %s29 = ssub.s32 %s16, %s28
    %s30 = ssub.s32 %s17, %s24
    %s31 = sor.u32 %s29, %s30
    %p32 = scmp.eq.s32.totalorder %s31, 0
    %s34 = sadd.s32 %s33, 1
    %s35 = scalar_select %p32, %s33, %s34
    %p38 = pneg %p32
    %p39 = scmp.eq.s32.totalorder %s9, 7
    %p40 = por %p38, %p39
    %p41 = scmp.ne.s32.totalorder %s33, %s36
    %p42 = scmp.eq.s32.totalorder %s9, 0
    %p43 = por %p41, %p42
    %p44 = scmp.ne.s32.totalorder %s33, %s36
    %p45 = scmp.eq.s32.totalorder %s14, 7
    %p46 = por %p44, %p45
    %p47 = scmp.ne.s32.totalorder %s36, %s37
    %p48 = scmp.eq.s32.totalorder %s14, 0
    %p49 = por %p47, %p48
    %p50 = scmp.ne.s32.totalorder %s36, %s37
    %p51 = scmp.eq.s32.totalorder %s15, 7
    %p52 = por %p50, %p51
    %p54 = scmp.ne.s32.totalorder %s37, %s53
    %p55 = scmp.eq.s32.totalorder %s15, 0
    %p56 = por %p54, %p55
    %s57 = ssub.s32 %s16, %s28
    %p58 = scmp.eq.s32.totalorder %s57, 0
    %s60 = sadd.s32 %s59, 1
    %s61 = scalar_select %p58, %s59, %s60
    %p64 = pneg %p58
    %p65 = scmp.eq.s32.totalorder %s9, 7
    %p66 = por %p64, %p65
    %p67 = scmp.ne.s32.totalorder %s59, %s62
    %p68 = scmp.eq.s32.totalorder %s9, 0
    %p69 = por %p67, %p68
    %p70 = scmp.ne.s32.totalorder %s59, %s62
    %p71 = scmp.eq.s32.totalorder %s14, 7
    %p72 = por %p70, %p71
    %p73 = scmp.ne.s32.totalorder %s62, %s63
    %p74 = scmp.eq.s32.totalorder %s14, 0
    %p75 = por %p73, %p74
    %p76 = scmp.ne.s32.totalorder %s62, %s63
    %p77 = scmp.eq.s32.totalorder %s15, 7
    %p78 = por %p76, %p77
    %p80 = scmp.ne.s32.totalorder %s63, %s79
    %p81 = scmp.eq.s32.totalorder %s15, 0
    %p82 = por %p80, %p81
    %s83 = ssub.s32 %s16, %s28
    %p84 = scmp.eq.s32.totalorder %s83, 0
    %s86 = sadd.s32 %s85, 1
    %s87 = scalar_select %p84, %s85, %s86
    %p90 = pneg %p84
    %p91 = scmp.eq.s32.totalorder %s9, 7
    %p92 = por %p90, %p91
    %p93 = scmp.ne.s32.totalorder %s85, %s88
    %p94 = scmp.eq.s32.totalorder %s9, 0
    %p95 = por %p93, %p94
    %p96 = scmp.ne.s32.totalorder %s85, %s88
    %p97 = scmp.eq.s32.totalorder %s14, 7
    %p98 = por %p96, %p97
    %p99 = scmp.ne.s32.totalorder %s88, %s89
    %p100 = scmp.eq.s32.totalorder %s14, 0
    %p101 = por %p99, %p100
    %p102 = scmp.ne.s32.totalorder %s88, %s89
    %p103 = scmp.eq.s32.totalorder %s15, 7
    %p104 = por %p102, %p103
    %p106 = scmp.ne.s32.totalorder %s89, %s105
    %p107 = scmp.eq.s32.totalorder %s15, 0
    %p108 = por %p106, %p107
    %p109 = scmp.le.s32.totalorder 1, %s9
    %p110 = scmp.lt.s32.totalorder %s9, 9
    %p111 = pnand %p109, %p110
    %p112 = pneg %p111
    // Predicated region
    $region9: #{up_concat_forward.2} parent=5 // pred_check
      _
    $region10: #{up_concat_forward.2} parent=5 // pred_check_branch
      %114 = sbr.rel (%p111) target = $region12
    $region11: #{up_concat_forward.2} parent=5 // pred_region
      %s115 = ssub.s32 %s9, 1
    $region12: #{up_concat_forward.2} parent=5 // pred_fallthru
      _
    %p116 = scmp.lt.s32.totalorder %s9, 8
    // Predicated region
    $region13: #{up_concat_forward.2} parent=5 // pred_check
      %p117 = pneg %p116
    $region14: #{up_concat_forward.2} parent=5 // pred_check_branch
      %119 = sbr.rel (%p117) target = $region16
    $region15: #{up_concat_forward.2} parent=5 // pred_region
      // Predicated region
      $region17: #{up_concat_forward.2} parent=15 // pred_check
        %p120 = pneg %p43
      $region18: #{up_concat_forward.2} parent=15 // pred_check_branch
        %122 = sbr.rel (%p120) target = $region20
      $region19: #{up_concat_forward.2} parent=15 // pred_region
        %p123 = scmp.lt.s32.totalorder %s16, 1
        %s124 = scalar_select %p123, %s16, 1
        %p125 = scmp.lt.s32.totalorder %s17, 3
        %s126 = scalar_select %p125, %s17, 3
        %s127 = smul.addr %s124, 4
        %s128 = sadd.s32 %s126, %s127
        %s129 = smul.addr %s128, 8
        %s130 = scalar_lea.vmem %s0, %s129
      $region20: #{up_concat_forward.2} parent=15 // pred_fallthru
        _
    $region16: #{up_concat_forward.2} parent=5 // pred_fallthru
      _
    %p131 = scmp.le.s32.totalorder 1, %s9
    %p132 = scmp.lt.s32.totalorder %s9, 9
    %p133 = pnand %p131, %p132
    %p134 = pneg %p133
    // Predicated region
    $region21: #{up_concat_forward.2} parent=5 // pred_check
      _
    $region22: #{up_concat_forward.2} parent=5 // pred_check_branch
      %136 = sbr.rel (%p133) target = $region24
    $region23: #{up_concat_forward.2} parent=5 // pred_region
      %s137 = ssub.s32 %s9, 1
      %p138 = scmp.lt.s32.totalorder %s18, 1
      %s139 = scalar_select %p138, %s18, 1
      %p140 = scmp.lt.s32.totalorder %s19, 3
      %s141 = scalar_select %p140, %s19, 3
      %s142 = smul.addr %s139, 4
      %s143 = sadd.s32 %s141, %s142
      %s144 = smul.addr %s143, 8
      %s145 = scalar_lea.vmem %s0, %s144
      %p146 = pneg %p49
      %p147 = pneg %p46
      %p148 = pneg %p75
      %p149 = pneg %p72
      %p150 = scmp.lt.s32.totalorder %s18, 1
      %s151 = scalar_select %p150, %s18, 1
      %s152 = smul.addr %s151, 8
      %s153 = scalar_lea.vmem %s1, %s152
      %p154 = pneg %p101
      %p155 = pneg %p98
      %p156 = scmp.lt.s32.totalorder %s18, 1
      %s157 = scalar_select %p156, %s18, 1
      %s158 = smul.addr %s157, 8
      %s159 = scalar_lea.vmem %s2, %s158
      %p160 = scmp.lt.s32.totalorder %s18, 1
      %s161 = scalar_select %p160, %s18, 1
      %p162 = scmp.lt.s32.totalorder %s19, 3
      %s163 = scalar_select %p162, %s19, 3
      %s164 = smul.addr %s161, 4
      %s165 = sadd.s32 %s163, %s164
      %s166 = smul.addr %s165, 8
      %s167 = scalar_lea.vmem %s0, %s166
      %p168 = scmp.lt.s32.totalorder %s18, 1
      %s169 = scalar_select %p168, %s18, 1
      %s170 = smul.addr %s169, 8
      %s171 = scalar_lea.vmem %s1, %s170
      %p172 = scmp.lt.s32.totalorder %s18, 1
      %s173 = scalar_select %p172, %s18, 1
      %s174 = smul.addr %s173, 8
      %s175 = scalar_lea.vmem %s2, %s174
      %p177 = scmp.eq.s32.totalorder %s19, 0
      // Predicated region
      $region25: #{up_concat_forward.2} parent=23 // pred_check
        %p178 = pneg %p177
      $region26: #{up_concat_forward.2} parent=23 // pred_check_branch
        %180 = sbr.rel (%p178) target = $region28
      $region27: #{up_concat_forward.2} parent=23 // pred_region
        %vm181 = vcmask 7168
        %182 = vst.msk [vmem:[%s171] sm:$0xff] %vm181, 0.0
        %vm183 = vcmask 64512
        %184 = vst.msk [vmem:[%s175] sm:$0xff] %vm183, 0.0
      $region28: #{up_concat_forward.2} parent=23 // pred_fallthru
        _
      %v185 = vld [vmem:[%s167] sm:$0xff]
      %v186 = vpack.c.bf16 %v185, %v185
      %v187 = vld [vmem:[%s171] sm:$0xff]
      %v188 = vunpack.c.l.bf16 %v186
      %189 = vadd.xlane.f32.xlu0 %v188
      %v190 = vpop.xlane.xlu0 %189
      %v191 = vadd.f32 %v187, %v190
      %vm192 = vcmask 7168
      %193 = vst.msk [vmem:[%s171] sm:$0xff] %vm192, %v191
      %v194 = vld [vmem:[%s175] sm:$0xff]
      %195 = vmatprep.subr.bf16.mxu0 0
      %196 = vmatpush1.bf16.xpose.msra.mxu0 0
      %197 = vmatprep.subr.bf16.mxu0 0
      %198 = vmatpush1.bf16.xpose.msra.mxu0 0
      %199 = vmatprep.subr.bf16.mxu0 0
      %200 = vmatpush1.bf16.xpose.msra.mxu0 0
      %201 = vmatprep.subr.bf16.mxu0 0
      %202 = vmatpush1.bf16.xpose.msra.mxu0 0
      %203 = vmatprep.subr.bf16.mxu0 0
      %204 = vmatpush1.bf16.xpose.msra.mxu0 0
      %205 = vmatprep.subr.bf16.mxu0 0
      %206 = vmatpush1.bf16.xpose.msra.mxu0 0
      %207 = vmatprep.subr.bf16.mxu0 0
      %208 = vmatpush1.bf16.xpose.msra.mxu0 0
      %209 = vmatprep.subr.bf16.mxu0 0
      %210 = vmatpush1.bf16.xpose.msra.mxu0 %v186
      %211 = vmatprep.subr.bf16.mxu0 0
      %212 = vmatpush2.bf16.xpose.msra.mxu0 0
      %213 = vmatprep.subr.bf16.mxu0 0
      %214 = vmatpush2.bf16.xpose.msra.mxu0 0
      %215 = vmatprep.subr.bf16.mxu0 0
      %216 = vmatpush2.bf16.xpose.msra.mxu0 0
      %217 = vmatprep.subr.bf16.mxu0 0
      %218 = vmatpush2.bf16.xpose.msra.mxu0 0
      %219 = vmatprep.subr.bf16.mxu0 0
      %220 = vmatpush2.bf16.xpose.msra.mxu0 0
      %221 = vmatprep.subr.bf16.mxu0 0
      %222 = vmatpush2.bf16.xpose.msra.mxu0 0
      %223 = vmatprep.subr.bf16.mxu0 0
      %224 = vmatpush2.bf16.xpose.msra.mxu0 0
      %225 = vmatprep.subr.bf16.mxu0 0
      %226 = vmatpush2.bf16.xpose.msra.mxu0 0
      %227 = vmatprep.mubr.bf16.mxu0 0
      %228 = vmatmul.mubr.bf16.gmra.mxu0 %v186
      %v229 = vpop.f32.mrf.mxu0
      %v230 = vadd.f32 0.0, %v229
      %v231 = vpop.f32.mrf.mxu0
      %v232 = vpop.f32.mrf.mxu0
      %v233 = vpop.f32.mrf.mxu0
      %234 = vdwg.mxu0
      %v235 = vadd.f32 %v194, %v230
      %vm236 = vcmask 64512
      %237 = vst.msk [vmem:[%s175] sm:$0xff] %vm236, %v235
      %p238 = scmp.lt.s32.totalorder %s18, 1
      %s239 = scalar_select %p238, %s18, 1
      %s240 = smul.addr %s239, 8
      %s241 = scalar_lea.vmem %s1, %s240
      %p242 = scmp.lt.s32.totalorder %s18, 1
      %s243 = scalar_select %p242, %s18, 1
      %s244 = smul.addr %s243, 8
      %s245 = scalar_lea.vmem %s2, %s244
      // Predicated region
      $region29: #{up_concat_forward.2} parent=23 // pred_check
        %p246 = pneg %p72
      $region30: #{up_concat_forward.2} parent=23 // pred_check_branch
        %248 = sbr.rel (%p246) target = $region32
      $region31: #{up_concat_forward.2} parent=23 // pred_region
        _
      $region32: #{up_concat_forward.2} parent=23 // pred_fallthru
        _
      // Predicated region
      $region33: #{up_concat_forward.2} parent=23 // pred_check
        %p249 = pneg %p98
      $region34: #{up_concat_forward.2} parent=23 // pred_check_branch
        %251 = sbr.rel (%p249) target = $region36
      $region35: #{up_concat_forward.2} parent=23 // pred_region
        _
      $region36: #{up_concat_forward.2} parent=23 // pred_fallthru
        _
    $region24: #{up_concat_forward.2} parent=5 // pred_fallthru
      _
    %p252 = scmp.le.s32.totalorder 2, %s9
    // Predicated region
    $region37: #{up_concat_forward.2} parent=5 // pred_check
      %p253 = pneg %p252
    $region38: #{up_concat_forward.2} parent=5 // pred_check_branch
      %255 = sbr.rel (%p253) target = $region40
    $region39: #{up_concat_forward.2} parent=5 // pred_region
      %s256 = ssub.s32 %s9, 2
      // Predicated region
      $region41: #{up_concat_forward.2} parent=39 // pred_check
        %p257 = pneg %p78
      $region42: #{up_concat_forward.2} parent=39 // pred_check_branch
        %259 = sbr.rel (%p257) target = $region44
      $region43: #{up_concat_forward.2} parent=39 // pred_region
        %p260 = scmp.lt.s32.totalorder %s20, 1
        %s261 = scalar_select %p260, %s20, 1
        %s262 = smul.addr %s261, 8
        %s263 = scalar_lea.vmem %s1, %s262
      $region44: #{up_concat_forward.2} parent=39 // pred_fallthru
        _
      // Predicated region
      $region45: #{up_concat_forward.2} parent=39 // pred_check
        %p264 = pneg %p104
      $region46: #{up_concat_forward.2} parent=39 // pred_check_branch
        %266 = sbr.rel (%p264) target = $region48
      $region47: #{up_concat_forward.2} parent=39 // pred_region
        %p267 = scmp.lt.s32.totalorder %s20, 1
        %s268 = scalar_select %p267, %s20, 1
        %s269 = smul.addr %s268, 8
        %s270 = scalar_lea.vmem %s2, %s269
      $region48: #{up_concat_forward.2} parent=39 // pred_fallthru
        _
    $region40: #{up_concat_forward.2} parent=5 // pred_fallthru
      _
  $region6: #{up_concat_forward.2} parent=0 // loop_footer
    %s13 = sadd.s32 1, %s9
  $region7: #{up_concat_forward.2} parent=0 // loop_footer_branch
    %8 = sbr.rel target = $region3
  $region8: #{up_concat_forward.2} parent=0 // loop_exit
    _

// kernel: up_concat_forward.3
$region0: #{up_concat_forward.3}
  #allocation0 [shape = 'u32[]', space=smem, size = 0x4, offset = 0x4, fixed_abs, tag = 'smem constant byte address 0x4 - core index']
  #allocation1 [shape = 'u32[144,128]{1,0:T(1,128)}', space=vmem, size = 0x12000, scoped, tag = 'internal scratch']
  %s0 = inlined_call_operand.vmem [shape: f32[2,8,512], index: 0, kind: input, shape index: {}]
  %s1 = inlined_call_operand.vmem [shape: bf16[32,8], index: 1, kind: input, shape index: {}]
  %s2 = inlined_call_operand.vmem [shape: f32[32,1], index: 2, kind: input, shape index: {}]
  %s3 = inlined_call_operand.vmem [shape: f32[32,1], index: 3, kind: input, shape index: {}]
  %s4 = inlined_call_operand.vmem [shape: bf16[2,32,512], index: 4, kind: output, shape index: {}]
  %s5 = sld [smem:[#allocation0]]
  $region86: #{up_concat_forward.3} parent=0
    _
  %s7 = ssub.s32 1, %s5
  %s8 = scalar_select 0, %s7, %s5
  $region1: #{up_concat_forward.3} parent=0
    #allocation2 [shape = 'u8[16384]{0}', space=vmem, size = 0x4000, scoped, tag = 'output window, operand 0']
    loop: start=0, step=1, limit=10
    $region2: #{up_concat_forward.3} parent=1 // loop_pre_header
      _
    $region3: #{up_concat_forward.3} parent=1 // loop_header
      %s10 = sphi 0, %s14
      %p11 = scmp.ge.s32.totalorder %s10, 10
      %s17 = sphi 0, %s29
      %s18 = sphi 0, %s25
      %s19 = sphi 0, %s17
      %s20 = sphi 0, %s18
      %s21 = sphi 0, %s19
      %s22 = sphi 0, %s20
      %s34 = sphi 0, %s36
      %s37 = sphi 0, %s34
      %s38 = sphi 0, %s37
      %s54 = sphi 0, %s38
      %s58 = sphi 0, %s58
      %s60 = sphi 0, %s58
      %s61 = sphi 0, %s60
      %s75 = sphi 0, %s61
      %s79 = sphi 0, %s79
      %s81 = sphi 0, %s79
      %s82 = sphi 0, %s81
      %s96 = sphi 0, %s82
      %s100 = sphi 0, %s100
      %s102 = sphi 0, %s100
      %s103 = sphi 0, %s102
      %s117 = sphi 0, %s103
      %s125 = sphi 0, %s127
      %s128 = sphi 0, %s125
      %s129 = sphi 0, %s128
      %s145 = sphi 0, %s129
    $region4: #{up_concat_forward.3} parent=1 // loop_header_branch
      %13 = sbr.rel (%p11) target = $region8
    $region5: #{up_concat_forward.3} parent=1 // loop_body
      %s15 = ssub.s32 %s10, 1
      %s16 = ssub.s32 %s10, 2
      %s23 = sadd.s32 1, %s18
      %p24 = scmp.ge.s32.totalorder %s23, 4
      %s25 = scalar_select %p24, 0, %s23
      %s26 = sadd.s32 1, %s17
      %s27 = scalar_select %p24, %s26, %s17
      %p28 = scmp.ge.s32.totalorder %s27, 2
      %s29 = scalar_select %p28, 0, %s27
      %s30 = ssub.s32 %s17, %s29
      %s31 = ssub.s32 %s18, %s25
      %s32 = sor.u32 %s30, %s31
      %p33 = scmp.eq.s32.totalorder %s32, 0
      %s35 = sadd.s32 %s34, 1
      %s36 = scalar_select %p33, %s34, %s35
      %p39 = pneg %p33
      %p40 = scmp.eq.s32.totalorder %s10, 7
      %p41 = por %p39, %p40
      %p42 = scmp.ne.s32.totalorder %s34, %s37
      %p43 = scmp.eq.s32.totalorder %s10, 0
      %p44 = por %p42, %p43
      %p45 = scmp.ne.s32.totalorder %s34, %s37
      %p46 = scmp.eq.s32.totalorder %s15, 7
      %p47 = por %p45, %p46
      %p48 = scmp.ne.s32.totalorder %s37, %s38
      %p49 = scmp.eq.s32.totalorder %s15, 0
      %p50 = por %p48, %p49
      %p51 = scmp.ne.s32.totalorder %s37, %s38
      %p52 = scmp.eq.s32.totalorder %s16, 7
      %p53 = por %p51, %p52
      %p55 = scmp.ne.s32.totalorder %s38, %s54
      %p56 = scmp.eq.s32.totalorder %s16, 0
      %p57 = por %p55, %p56
      %s59 = sadd.s32 %s58, 1
      %p62 = scmp.eq.s32.totalorder %s10, 7
      %p63 = scmp.ne.s32.totalorder %s58, %s60
      %p64 = scmp.eq.s32.totalorder %s10, 0
      %p65 = por %p63, %p64
      %p66 = scmp.ne.s32.totalorder %s58, %s60
      %p67 = scmp.eq.s32.totalorder %s15, 7
      %p68 = por %p66, %p67
      %p69 = scmp.ne.s32.totalorder %s60, %s61
      %p70 = scmp.eq.s32.totalorder %s15, 0
      %p71 = por %p69, %p70
      %p72 = scmp.ne.s32.totalorder %s60, %s61
      %p73 = scmp.eq.s32.totalorder %s16, 7
      %p74 = por %p72, %p73
      %p76 = scmp.ne.s32.totalorder %s61, %s75
      %p77 = scmp.eq.s32.totalorder %s16, 0
      %p78 = por %p76, %p77
      %s80 = sadd.s32 %s79, 1
      %p83 = scmp.eq.s32.totalorder %s10, 7
      %p84 = scmp.ne.s32.totalorder %s79, %s81
      %p85 = scmp.eq.s32.totalorder %s10, 0
      %p86 = por %p84, %p85
      %p87 = scmp.ne.s32.totalorder %s79, %s81
      %p88 = scmp.eq.s32.totalorder %s15, 7
      %p89 = por %p87, %p88
      %p90 = scmp.ne.s32.totalorder %s81, %s82
      %p91 = scmp.eq.s32.totalorder %s15, 0
      %p92 = por %p90, %p91
      %p93 = scmp.ne.s32.totalorder %s81, %s82
      %p94 = scmp.eq.s32.totalorder %s16, 7
      %p95 = por %p93, %p94
      %p97 = scmp.ne.s32.totalorder %s82, %s96
      %p98 = scmp.eq.s32.totalorder %s16, 0
      %p99 = por %p97, %p98
      %s101 = sadd.s32 %s100, 1
      %p104 = scmp.eq.s32.totalorder %s10, 7
      %p105 = scmp.ne.s32.totalorder %s100, %s102
      %p106 = scmp.eq.s32.totalorder %s10, 0
      %p107 = por %p105, %p106
      %p108 = scmp.ne.s32.totalorder %s100, %s102
      %p109 = scmp.eq.s32.totalorder %s15, 7
      %p110 = por %p108, %p109
      %p111 = scmp.ne.s32.totalorder %s102, %s103
      %p112 = scmp.eq.s32.totalorder %s15, 0
      %p113 = por %p111, %p112
      %p114 = scmp.ne.s32.totalorder %s102, %s103
      %p115 = scmp.eq.s32.totalorder %s16, 7
      %p116 = por %p114, %p115
      %p118 = scmp.ne.s32.totalorder %s103, %s117
      %p119 = scmp.eq.s32.totalorder %s16, 0
      %p120 = por %p118, %p119
      %s121 = ssub.s32 %s17, %s29
      %s122 = ssub.s32 %s18, %s25
      %s123 = sor.u32 %s121, %s122
      %p124 = scmp.eq.s32.totalorder %s123, 0
      %s126 = sadd.s32 %s125, 1
      %s127 = scalar_select %p124, %s125, %s126
      %p130 = pneg %p124
      %p131 = scmp.eq.s32.totalorder %s10, 7
      %p132 = por %p130, %p131
      %p133 = scmp.ne.s32.totalorder %s125, %s128
      %p134 = scmp.eq.s32.totalorder %s10, 0
      %p135 = por %p133, %p134
      %p136 = scmp.ne.s32.totalorder %s125, %s128
      %p137 = scmp.eq.s32.totalorder %s15, 7
      %p138 = por %p136, %p137
      %p139 = scmp.ne.s32.totalorder %s128, %s129
      %p140 = scmp.eq.s32.totalorder %s15, 0
      %p141 = por %p139, %p140
      %p142 = scmp.ne.s32.totalorder %s128, %s129
      %p143 = scmp.eq.s32.totalorder %s16, 7
      %p144 = por %p142, %p143
      %p146 = scmp.ne.s32.totalorder %s129, %s145
      %p147 = scmp.eq.s32.totalorder %s16, 0
      %p148 = por %p146, %p147
      %p149 = scmp.le.s32.totalorder 1, %s10
      %p150 = scmp.lt.s32.totalorder %s10, 9
      %p151 = pnand %p149, %p150
      %p152 = pneg %p151
      // Predicated region
      $region9: #{up_concat_forward.3} parent=5 // pred_check
        _
      $region10: #{up_concat_forward.3} parent=5 // pred_check_branch
        %154 = sbr.rel (%p151) target = $region12
      $region11: #{up_concat_forward.3} parent=5 // pred_region
        %s155 = ssub.s32 %s10, 1
        // Predicated region
        $region13: #{up_concat_forward.3} parent=11 // pred_check
          %p156 = pneg %p71
        $region14: #{up_concat_forward.3} parent=11 // pred_check_branch
          %158 = sbr.rel (%p156) target = $region16
        $region15: #{up_concat_forward.3} parent=11 // pred_region
          _
        $region16: #{up_concat_forward.3} parent=11 // pred_fallthru
          _
        // Predicated region
        $region17: #{up_concat_forward.3} parent=11 // pred_check
          %p159 = pneg %p92
        $region18: #{up_concat_forward.3} parent=11 // pred_check_branch
          %161 = sbr.rel (%p159) target = $region20
        $region19: #{up_concat_forward.3} parent=11 // pred_region
          _
        $region20: #{up_concat_forward.3} parent=11 // pred_fallthru
          _
        // Predicated region
        $region21: #{up_concat_forward.3} parent=11 // pred_check
          %p162 = pneg %p113
        $region22: #{up_concat_forward.3} parent=11 // pred_check_branch
          %164 = sbr.rel (%p162) target = $region24
        $region23: #{up_concat_forward.3} parent=11 // pred_region
          _
        $region24: #{up_concat_forward.3} parent=11 // pred_fallthru
          _
      $region12: #{up_concat_forward.3} parent=5 // pred_fallthru
        _
      %p165 = scmp.lt.s32.totalorder %s10, 8
      // Predicated region
      $region25: #{up_concat_forward.3} parent=5 // pred_check
        %p166 = pneg %p165
      $region26: #{up_concat_forward.3} parent=5 // pred_check_branch
        %168 = sbr.rel (%p166) target = $region28
      $region27: #{up_concat_forward.3} parent=5 // pred_region
        // Predicated region
        $region29: #{up_concat_forward.3} parent=27 // pred_check
          %p169 = pneg %p44
        $region30: #{up_concat_forward.3} parent=27 // pred_check_branch
          %171 = sbr.rel (%p169) target = $region32
        $region31: #{up_concat_forward.3} parent=27 // pred_region
          %p172 = scmp.lt.s32.totalorder %s17, 1
          %s173 = scalar_select %p172, %s17, 1
          %p174 = scmp.lt.s32.totalorder %s18, 3
          %s175 = scalar_select %p174, %s18, 3
          %s176 = smul.addr %s173, 4
          %s177 = sadd.s32 %s175, %s176
          %s178 = smul.addr %s177, 8
          %s179 = scalar_lea.vmem %s0, %s178
        $region32: #{up_concat_forward.3} parent=27 // pred_fallthru
          _
      $region28: #{up_concat_forward.3} parent=5 // pred_fallthru
        _
      %p180 = scmp.le.s32.totalorder 1, %s10
      %p181 = scmp.lt.s32.totalorder %s10, 9
      %p182 = pnand %p180, %p181
      %p183 = pneg %p182
      // Predicated region
      $region33: #{up_concat_forward.3} parent=5 // pred_check
        _
      $region34: #{up_concat_forward.3} parent=5 // pred_check_branch
        %185 = sbr.rel (%p182) target = $region36
      $region35: #{up_concat_forward.3} parent=5 // pred_region
        %s186 = ssub.s32 %s10, 1
        %p187 = scmp.lt.s32.totalorder %s19, 1
        %s188 = scalar_select %p187, %s19, 1
        %p189 = scmp.lt.s32.totalorder %s20, 3
        %s190 = scalar_select %p189, %s20, 3
        %s191 = smul.addr %s188, 4
        %s192 = sadd.s32 %s190, %s191
        %s193 = smul.addr %s192, 8
        %s194 = scalar_lea.vmem %s0, %s193
        %p195 = pneg %p50
        %p196 = pneg %p47
        %p197 = pneg %p71
        %p198 = pneg %p68
        %p199 = pneg %p92
        %p200 = pneg %p89
        %p201 = pneg %p113
        %p202 = pneg %p110
        %p203 = pneg %p141
        %p204 = pneg %p138
        %s205 = sand.u32 %s128, 1
        %s206 = sand.u32 %s128, 1
        %s207 = smul.addr %s206, 16
        %s208 = scalar_lea.vmem [#allocation2], %s207
        %p209 = scmp.lt.s32.totalorder %s19, 1
        %s210 = scalar_select %p209, %s19, 1
        %p211 = scmp.lt.s32.totalorder %s20, 3
        %s212 = scalar_select %p211, %s20, 3
        %s213 = smul.addr %s210, 4
        %s214 = sadd.s32 %s212, %s213
        %s215 = smul.addr %s214, 8
        %s216 = scalar_lea.vmem %s0, %s215
        %v218 = vld [vmem:[%s216] sm:$0xff]
        %v219 = vpack.c.bf16 %v218, %v218
        %v220 = vld [vmem:[%s1] sm:$0xf]
        %v221 = vld [vmem:[%s1 + $0x4] sm:$0xf]
        %v222 = vld [vmem:[%s1 + $0x8] sm:$0xf]
        %v223 = vld [vmem:[%s1 + $0xc] sm:$0xf]
        %v228 = vunpack.c.l.b16 %v220
        %v229 = vunpack.c.l.b16 %v221
        %v230 = vunpack.c.l.b16 %v222
        %v231 = vunpack.c.l.b16 %v223
        %v232 = vpack.c.b16 %v229, %v228
        %v233 = vpack.c.b16 %v231, %v230
        %vm234 = vcmask 64512
        %v236 = vsel %vm234, %v232, 0
        %v239 = vsel %vm234, %v233, 0
        %vm241 = vcmask 1043456
        %v243 = vsel %vm241, %v219, 0
        %245 = vmatprep.subr.bf16.mxu0 0
        %246 = vmatpush1.bf16.msra.mxu0 0
        %247 = vmatprep.subr.bf16.mxu0 0
        %248 = vmatpush1.bf16.msra.mxu0 0
        %249 = vmatprep.subr.bf16.mxu0 0
        %250 = vmatpush1.bf16.msra.mxu0 0
        %251 = vmatprep.subr.bf16.mxu0 0
        %252 = vmatpush1.bf16.msra.mxu0 0
        %253 = vmatprep.subr.bf16.mxu0 0
        %254 = vmatpush1.bf16.msra.mxu0 0
        %255 = vmatprep.subr.bf16.mxu0 0
        %256 = vmatpush1.bf16.msra.mxu0 0
        %257 = vmatprep.subr.bf16.mxu0 0
        %258 = vmatpush1.bf16.msra.mxu0 0
        %259 = vmatprep.subr.bf16.mxu0 0
        %260 = vmatpush1.bf16.msra.mxu0 %v243
        %261 = vmatprep.subr.bf16.mxu0 0
        %262 = vmatpush2.bf16.msra.mxu0 0
        %263 = vmatprep.subr.bf16.mxu0 0
        %264 = vmatpush2.bf16.msra.mxu0 0
        %265 = vmatprep.subr.bf16.mxu0 0
        %266 = vmatpush2.bf16.msra.mxu0 0
        %267 = vmatprep.subr.bf16.mxu0 0
        %268 = vmatpush2.bf16.msra.mxu0 0
        %269 = vmatprep.subr.bf16.mxu0 0
        %270 = vmatpush2.bf16.msra.mxu0 0
        %271 = vmatprep.subr.bf16.mxu0 0
        %272 = vmatpush2.bf16.msra.mxu0 0
        %273 = vmatprep.subr.bf16.mxu0 0
        %274 = vmatpush2.bf16.msra.mxu0 0
        %275 = vmatprep.subr.bf16.mxu0 0
        %276 = vmatpush2.bf16.msra.mxu0 0
        %277 = vmatprep.mubr.bf16.mxu0 0
        %278 = vmatmul.mubr.bf16.gmra.mxu0 %v236
        %v279 = vpop.f32.mrf.mxu0
        %v280 = vadd.f32 0.0, %v279
        %v281 = vpop.f32.mrf.mxu0
        %v282 = vpop.f32.mrf.mxu0
        %v283 = vadd.f32 0.0, %v282
        %v284 = vpop.f32.mrf.mxu0
        %285 = vmatprep.mubr.bf16.mxu0 0
        %286 = vmatmul.mubr.bf16.gmra.mxu0 %v239
        %v287 = vpop.f32.mrf.mxu0
        %v288 = vadd.f32 0.0, %v287
        %v289 = vpop.f32.mrf.mxu0
        %v290 = vpop.f32.mrf.mxu0
        %v291 = vadd.f32 0.0, %v290
        %v292 = vpop.f32.mrf.mxu0
        %293 = vdwg.mxu0
        %v294 = vld [vmem:[%s2] sm:$0xff]
        %v295 = vld [vmem:[%s2 + $0x8] sm:$0xff]
        %v296 = vld [vmem:[%s2 + $0x10] sm:$0xff]
        %v297 = vld [vmem:[%s2 + $0x18] sm:$0xff]
        %299 = vset.pattern.permute.xlu0 0
        %300 = vperm.xlu0 %299, %v294
        %v301 = vpop.permute.xlu0 %300
        %304 = vset.pattern.permute.xlu0 0
        %305 = vperm.xlu0 %304, %v295
        %v306 = vpop.permute.xlu0 %305
        %309 = vset.pattern.permute.xlu0 0
        %310 = vperm.xlu0 %309, %v296
        %v311 = vpop.permute.xlu0 %310
        %314 = vset.pattern.permute.xlu0 0
        %315 = vperm.xlu0 %314, %v297
        %v316 = vpop.permute.xlu0 %315
        %v318 = vmul.f32 %v280, %v301
        %v319 = vmul.f32 %v283, %v306
        %v320 = vmul.f32 %v288, %v311
        %v321 = vmul.f32 %v291, %v316
        %v322 = vld [vmem:[%s3] sm:$0xff]
        %v323 = vld [vmem:[%s3 + $0x8] sm:$0xff]
        %v324 = vld [vmem:[%s3 + $0x10] sm:$0xff]
        %v325 = vld [vmem:[%s3 + $0x18] sm:$0xff]
        %327 = vset.pattern.permute.xlu0 0
        %328 = vperm.xlu0 %327, %v322
        %v329 = vpop.permute.xlu0 %328
        %332 = vset.pattern.permute.xlu0 0
        %333 = vperm.xlu0 %332, %v323
        %v334 = vpop.permute.xlu0 %333
        %337 = vset.pattern.permute.xlu0 0
        %338 = vperm.xlu0 %337, %v324
        %v339 = vpop.permute.xlu0 %338
        %342 = vset.pattern.permute.xlu0 0
        %343 = vperm.xlu0 %342, %v325
        %v344 = vpop.permute.xlu0 %343
        %v346 = vadd.f32 %v318, %v329
        %v347 = vadd.f32 %v319, %v334
        %v348 = vadd.f32 %v320, %v339
        %v349 = vadd.f32 %v321, %v344
        %v350 = vpack.c.bf16 %v347, %v346
        %v351 = vpack.c.bf16 %v349, %v348
        %v354 = vunpack.c.l.b16 %v350
        %v355 = vunpack.c.h.b16 %v350
        %v356 = vunpack.c.l.b16 %v351
        %v357 = vunpack.c.h.b16 %v351
        %v358 = vpack.c.b16 %v354, %v354
        %v359 = vpack.c.b16 %v355, %v355
        %v360 = vpack.c.b16 %v356, %v356
        %v361 = vpack.c.b16 %v357, %v357
        %366 = vst [vmem:[%s208] sm:$0xf] %v358
        %367 = vst [vmem:[%s208 + $0x4] sm:$0xf] %v359
        %368 = vst [vmem:[%s208 + $0x8] sm:$0xf] %v360
        %369 = vst [vmem:[%s208 + $0xc] sm:$0xf] %v361
        %s370 = sand.u32 %s128, 1
        %s371 = sand.u32 %s128, 1
        %s372 = smul.addr %s371, 16
        %s373 = scalar_lea.vmem [#allocation2], %s372
        // Predicated region
        $region37: #{up_concat_forward.3} parent=35 // pred_check
          %p374 = pneg %p138
        $region38: #{up_concat_forward.3} parent=35 // pred_check_branch
          %376 = sbr.rel (%p374) target = $region40
        $region39: #{up_concat_forward.3} parent=35 // pred_region
          %s377 = smul.addr %s19, 16
          %s378 = sadd.s32 %s20, %s377
          %s379 = smul.addr %s378, 4
          %s380 = scalar_lea.vmem %s4, %s379
          // Predicated region
          $region41: #{up_concat_forward.3} parent=39 // pred_check
            _
          $region42: #{up_concat_forward.3} parent=39 // pred_check_branch
            %382 = sbr.rel (0) target = $region44
          $region43: #{up_concat_forward.3} parent=39 // pred_region
            // Predicated region
            $region45: #{up_concat_forward.3} parent=43 // pred_check
              _
            $region46: #{up_concat_forward.3} parent=43 // pred_check_branch
              %384 = sbr.rel target = $region48
            $region47: #{up_concat_forward.3} parent=43 // pred_region
              // Predicated region
              $region60: #{up_concat_forward.3} parent=47 // pred_check
                _
              $region61: #{up_concat_forward.3} parent=47 // pred_check_branch
                %406 = sbr.rel (0) target = $region63
              $region62: #{up_concat_forward.3} parent=47 // pred_region
                loop: start=0, step=1, limit=1
                $region64: #{up_concat_forward.3} parent=62 // loop_pre_header
                  _
                $region65: #{up_concat_forward.3} parent=62 // loop_header
                  %s408 = sphi 0, %s412
                  %p409 = scmp.ge.s32.totalorder %s408, 1
                  %s413 = sphi %s373, %s373
                  %s414 = sphi %s380, %s380
                $region66: #{up_concat_forward.3} parent=62 // loop_header_branch
                  %411 = sbr.rel (%p409) target = $region70
                $region67: #{up_concat_forward.3} parent=62 // loop_body
                  _
                $region68: #{up_concat_forward.3} parent=62 // loop_footer
                  %s412 = sadd.s32 1, %s408
                $region69: #{up_concat_forward.3} parent=62 // loop_footer_branch
                  %407 = sbr.rel target = $region65
                $region70: #{up_concat_forward.3} parent=62 // loop_exit
                  _
                %s416 = ssub.s32 16, 1
                loop: start=0, step=1, limit=1
                $region71: #{up_concat_forward.3} parent=62 // loop_pre_header
                  _
                $region72: #{up_concat_forward.3} parent=62 // loop_header
                  %s418 = sphi 0, %s422
                  %p419 = scmp.ge.s32.totalorder %s418, 1
                  %s423 = sphi %s373, %s373
                  %s424 = sphi %s380, %s380
                $region73: #{up_concat_forward.3} parent=62 // loop_header_branch
                  %421 = sbr.rel (%p419) target = $region77
                $region74: #{up_concat_forward.3} parent=62 // loop_body
                  %v425 = vld [vmem:[%s423] sm:%s416]
                  %426 = vst [vmem:[%s424] sm:%s416] %v425
                  %v427 = vld [vmem:[%s423 + $0x4] sm:%s416]
                  %428 = vst [vmem:[%s424 + $0x10] sm:%s416] %v427
                  %v429 = vld [vmem:[%s423 + $0x8] sm:%s416]
                  %430 = vst [vmem:[%s424 + $0x20] sm:%s416] %v429
                  %v431 = vld [vmem:[%s423 + $0xc] sm:%s416]
                  %432 = vst [vmem:[%s424 + $0x30] sm:%s416] %v431
                $region75: #{up_concat_forward.3} parent=62 // loop_footer
                  %s422 = sadd.s32 1, %s418
                $region76: #{up_concat_forward.3} parent=62 // loop_footer_branch
                  %417 = sbr.rel target = $region72
                $region77: #{up_concat_forward.3} parent=62 // loop_exit
                  _
              $region63: #{up_concat_forward.3} parent=47 // pred_fallthru
                _
            $region48: #{up_concat_forward.3} parent=43 // pred_fallthru
              _
            // Predicated region
            $region49: #{up_concat_forward.3} parent=43 // pred_check
              _
            $region50: #{up_concat_forward.3} parent=43 // pred_check_branch
              %386 = sbr.rel (0) target = $region52
            $region51: #{up_concat_forward.3} parent=43 // pred_region
              %s388 = ssub.s32 16, 1
              loop: start=0, step=1, limit=1
              $region53: #{up_concat_forward.3} parent=51 // loop_pre_header
                _
              $region54: #{up_concat_forward.3} parent=51 // loop_header
                %s390 = sphi 0, %s394
                %p391 = scmp.ge.s32.totalorder %s390, 1
                %s395 = sphi %s373, %s373
                %s396 = sphi %s380, %s380
              $region55: #{up_concat_forward.3} parent=51 // loop_header_branch
                %393 = sbr.rel (%p391) target = $region59
              $region56: #{up_concat_forward.3} parent=51 // loop_body
                %v397 = vld [vmem:[%s395] sm:%s388]
                %398 = vst [vmem:[%s396] sm:%s388] %v397
                %v399 = vld [vmem:[%s395 + $0x4] sm:%s388]
                %400 = vst [vmem:[%s396 + $0x10] sm:%s388] %v399
                %v401 = vld [vmem:[%s395 + $0x8] sm:%s388]
                %402 = vst [vmem:[%s396 + $0x20] sm:%s388] %v401
                %v403 = vld [vmem:[%s395 + $0xc] sm:%s388]
                %404 = vst [vmem:[%s396 + $0x30] sm:%s388] %v403
              $region57: #{up_concat_forward.3} parent=51 // loop_footer
                %s394 = sadd.s32 1, %s390
              $region58: #{up_concat_forward.3} parent=51 // loop_footer_branch
                %389 = sbr.rel target = $region54
              $region59: #{up_concat_forward.3} parent=51 // loop_exit
                _
            $region52: #{up_concat_forward.3} parent=43 // pred_fallthru
              _
          $region44: #{up_concat_forward.3} parent=39 // pred_fallthru
            _
          %433 = vnop
        $region40: #{up_concat_forward.3} parent=35 // pred_fallthru
          _
      $region36: #{up_concat_forward.3} parent=5 // pred_fallthru
        _
      %p434 = scmp.le.s32.totalorder 2, %s10
      // Predicated region
      $region78: #{up_concat_forward.3} parent=5 // pred_check
        %p435 = pneg %p434
      $region79: #{up_concat_forward.3} parent=5 // pred_check_branch
        %437 = sbr.rel (%p435) target = $region81
      $region80: #{up_concat_forward.3} parent=5 // pred_region
        %s438 = ssub.s32 %s10, 2
        // Predicated region
        $region82: #{up_concat_forward.3} parent=80 // pred_check
          %p439 = pneg %p144
        $region83: #{up_concat_forward.3} parent=80 // pred_check_branch
          %441 = sbr.rel (%p439) target = $region85
        $region84: #{up_concat_forward.3} parent=80 // pred_region
          %s442 = sand.u32 %s129, 1
          %s443 = sand.u32 %s129, 1
          %s444 = smul.addr %s443, 16
          %s445 = scalar_lea.vmem [#allocation2], %s444
        $region85: #{up_concat_forward.3} parent=80 // pred_fallthru
          _
      $region81: #{up_concat_forward.3} parent=5 // pred_fallthru
        _
    $region6: #{up_concat_forward.3} parent=1 // loop_footer
      %s14 = sadd.s32 1, %s10
    $region7: #{up_concat_forward.3} parent=1 // loop_footer_branch
      %9 = sbr.rel target = $region3
    $region8: #{up_concat_forward.3} parent=1 // loop_exit
      _

</llo_original>
